<compile_context>
chip_gen: v6e
topology: v6e:2x2x1
jax: 0.10.0
libtpu: 0.0.40
codegen_flags: <defaults>
</compile_context>

<pallas_src>
import functools
import math

import jax
import jax.numpy as jnp
from jax import lax
from jax.experimental import pallas as pl
from jax.experimental.pallas import tpu as pltpu


def _build_pe(d_model: int, max_len: int = 5000) -> jnp.ndarray:
    """Reference sinusoidal table (same as the PyTorch buffer), shape (max_len, 1, d_model)."""
    position = jnp.arange(0, max_len, dtype=jnp.float32)[:, None]
    div_term = jnp.exp(
        jnp.arange(0, d_model, 2, dtype=jnp.float32) * (-math.log(10000.0) / d_model)
    )
    angles = position * div_term
    pe = jnp.zeros((max_len, d_model), dtype=jnp.float32)
    pe = pe.at[:, 0::2].set(jnp.sin(angles))
    pe = pe.at[:, 1::2].set(jnp.cos(angles))
    return pe[:, None, :]


# ----------------------------------------------------------------------------- kernel


def _pe_add_kernel(x_ref, p_ref, o_ref, *, tile_rows, fold):
    # x_ref / o_ref : (tile_rows, lanes) with lanes = fold * batch * d_model.
    # p_ref         : (3, lanes) resident params: [freq, parity(0=sin/1=cos), fold pos offset].
    freq = p_ref[0:1, :]
    parity = p_ref[1:2, :]

    folded_row = pl.program_id(0) * tile_rows + lax.broadcasted_iota(
        jnp.int32, x_ref.shape, 0
    )
    if fold == 1:
        pos = folded_row.astype(jnp.float32)
    else:
        pos_off = p_ref[2:3, :]
        pos = folded_row.astype(jnp.float32) * jnp.float32(fold) + pos_off

    angle = pos * freq
    # Exact sin/cos selection by lane parity (avoids the +pi/2 phase-add drift
    # at large positions).  Both transcendentals go to the EUP slot.
    pe = jnp.where(parity > 0.5, jnp.cos(angle), jnp.sin(angle))

    xv = x_ref[...]
    if xv.dtype == jnp.float32:
        o_ref[...] = xv + pe
    else:
        o_ref[...] = (xv.astype(jnp.float32) + pe).astype(o_ref.dtype)


# ----------------------------------------------------------------------------- tiling helpers


def _target_block_bytes() -> int:
    """Per-block byte target derived from this chip's VMEM (2 in + 2 out double-buffers)."""
    try:
        vmem = int(pltpu.get_tpu_info().vmem_capacity_bytes)
    except Exception:
        vmem = 64 << 20  # assume the smallest generation (v7x: 64 MiB / TensorCore)
    return max(2 << 20, min(8 << 20, (vmem // 2) // 4))


def _choose_fold(seq_len: int, w: int, *, lane: int = 128, target_lanes: int = 512,
                 max_lanes: int = 8192) -> int:
    """Fold k sequence rows into the lane dim so lanes % 128 == 0 and lanes >= ~512."""
    if w % lane == 0 and w >= target_lanes:
        return 1
    best_aligned = None
    for k in range(1, seq_len + 1):
        if seq_len % k:
            continue
        kw = k * w
        if kw % lane == 0:
            if kw >= target_lanes:
                return k
            best_aligned = k
        if kw > max_lanes:
            break
    return best_aligned if best_aligned is not None else 1


def _choose_tile_rows(total_rows: int, row_bytes: int, sublane: int, target_bytes: int) -> int:
    """Largest sublane-aligned row tile <= target_bytes, preferring tiles that divide
    total_rows (no ragged masked tail) and yield an even step count (2-TC sharding)."""
    if total_rows <= sublane:
        return total_rows
    rows = min(total_rows, max(sublane, target_bytes // max(1, row_bytes)))
    rows = max(sublane, (rows // sublane) * sublane)
    if rows >= total_rows:
        # Everything fits in one block: split in two so the "parallel" axis can be
        # sharded across both v7x TensorCores.
        if total_rows >= 2 * sublane:
            half = -(-((total_rows + 1) // 2) // sublane) * sublane
            return min(half, total_rows)
        return total_rows
    lo = max(sublane, rows - 64 * sublane)
    best_div = None
    for cand in range(rows, lo - 1, -sublane):
        if total_rows % cand == 0:
            n = total_rows // cand
            if n % 2 == 0:
                return cand
            if best_div is None:
                best_div = cand
    return best_div if best_div is not None else rows


# ----------------------------------------------------------------------------- wrapper


def positional_encoding_forward(x: jnp.ndarray, max_len: int = 5000,
                                donate_x: bool = False) -> jnp.ndarray:
    """x: (seq_len, batch, d_model). Returns x + pe[:seq_len] (pe generated in-kernel)."""
    seq_len, batch, d_model = x.shape
    if seq_len > max_len:
        raise ValueError(f"seq_len={seq_len} exceeds max_len={max_len}")
    if d_model % 2 != 0:
        raise ValueError("d_model must be even (matches the PyTorch reference table)")

    w = batch * d_model
    fold = _choose_fold(seq_len, w)
    rows_total = seq_len // fold
    lanes = fold * w
    x2 = x.reshape(rows_total, lanes)  # contiguity-preserving (zero-copy) reshape

    # Tiny resident parameter slab (3, lanes): frequency, parity, fold position offset.
    # Lane c maps to original (pos = folded_row*fold + c//w, d = c % d_model).
    d_idx = jnp.arange(d_model, dtype=jnp.int32)
    two_i = ((d_idx // 2) * 2).astype(jnp.float32)
    inv_freq = jnp.exp(two_i * (-math.log(10000.0) / d_model))         # (d_model,)
    parity = (d_idx % 2).astype(jnp.float32)                           # 0 -> sin, 1 -> cos
    freq_row = jnp.tile(inv_freq, batch * fold)                        # (lanes,)
    parity_row = jnp.tile(parity, batch * fold)                        # (lanes,)
    pos_off_row = (jnp.arange(lanes, dtype=jnp.int32) // w).astype(jnp.float32)
    params = jnp.stack([freq_row, parity_row, pos_off_row], axis=0)    # (3, lanes) f32

    itemsize = jnp.dtype(x.dtype).itemsize
    sublane = max(8, 32 // itemsize)                                   # 8 f32 / 16 bf16 / 32 int8
    tile_rows = _choose_tile_rows(rows_total, lanes * itemsize, sublane,
                                  _target_block_bytes())
    grid = (pl.cdiv(rows_total, tile_rows),)

    block_bytes = tile_rows * lanes * itemsize
    vmem_limit = int(min(max(4 * block_bytes + (2 << 20), 16 << 20), 48 << 20))

    call_kwargs = {}
    if donate_x:
        call_kwargs["input_output_aliases"] = {0: 0}

    out2 = pl.pallas_call(
        functools.partial(_pe_add_kernel, tile_rows=tile_rows, fold=fold),
        out_shape=jax.ShapeDtypeStruct((rows_total, lanes), x.dtype),
        grid=grid,
        in_specs=[
            pl.BlockSpec((tile_rows, lanes), lambda s: (s, 0)),
            pl.BlockSpec((3, lanes), lambda s: (0, 0)),   # constant block -> DMA'd once, resident
        ],
        out_specs=pl.BlockSpec((tile_rows, lanes), lambda s: (s, 0)),
        compiler_params=pltpu.CompilerParams(
            dimension_semantics=("parallel",),            # seq tiles shard across v7x's 2 TCs
            vmem_limit_bytes=vmem_limit,
        ),
        **call_kwargs,
    )(x2, params)

    return out2.reshape(seq_len, batch, d_model)


# ----------------------------------------------------------------------------- demo / check


if __name__ == "__main__":
    key = jax.random.PRNGKey(0)

    # Case 1: small module-like shape; W = 64 (<128) exercises the lane-folding path.
    seq_len, batch, d_model = 8, 2, 32
    max_len = 64
    x = jax.random.normal(key, (seq_len, batch, d_model), dtype=jnp.float32)
    out = jax.block_until_ready(positional_encoding_forward(x, max_len=max_len))
    ref = x + _build_pe(d_model, max_len=max_len)[:seq_len]
    assert out.shape == x.shape
    assert jnp.allclose(out, ref, atol=5e-5, rtol=1e-5), "mismatch vs reference (folded path)"

    # Case 2: lane-dense W = 512 (%128), multi-step parallel grid path.
    seq_len2, batch2, d_model2 = 64, 4, 128
    x2 = jax.random.normal(jax.random.PRNGKey(1), (seq_len2, batch2, d_model2),
                           dtype=jnp.float32)
    out2 = jax.block_until_ready(positional_encoding_forward(x2, max_len=128))
    ref2 = x2 + _build_pe(d_model2, max_len=128)[:seq_len2]
    assert out2.shape == x2.shape
    assert jnp.allclose(out2, ref2, atol=5e-5, rtol=1e-5), "mismatch vs reference (wide path)"

    print("KERNEL_OK")
</pallas_src>

<mosaic_0001>
module attributes {stable_mosaic.version = 11 : i64} {
  func.func @_pe_add_kernel(%arg0: i32, %arg1: memref<1x512xf32, #tpu.memory_space<vmem>>, %arg2: memref<3x512xf32, #tpu.memory_space<vmem>>, %arg3: memref<1x512xf32, #tpu.memory_space<vmem>>) attributes {dimension_semantics = [#tpu.dimension_semantics<parallel>], iteration_bounds = array<i64: 1>, scalar_prefetch = 0 : i64, scratch_operands = 0 : i64, tpu.core_type = #tpu.core_type<tc>, window_params = [{transform_indices = @transform_0, window_bounds = array<i64: 1, 512>}, {pipeline_mode = #tpu.pipeline_mode<synchronous>, transform_indices = @transform_1, window_bounds = array<i64: 3, 512>}, {transform_indices = @transform_2, window_bounds = array<i64: 1, 512>}]} {
    %c0 = arith.constant 0 : index
    %c0_0 = arith.constant 0 : index
    %0 = vector.load %arg2[%c0, %c0_0] : memref<3x512xf32, #tpu.memory_space<vmem>>, vector<1x512xf32>
    %c1 = arith.constant 1 : index
    %c0_1 = arith.constant 0 : index
    %1 = vector.load %arg2[%c1, %c0_1] : memref<3x512xf32, #tpu.memory_space<vmem>>, vector<1x512xf32>
    %c1_i32 = arith.constant 1 : i32
    %2 = arith.muli %arg0, %c1_i32 : i32
    %3 = tpu.iota {dimensions = array<i32: 0>} : vector<1x512xi32>
    %4 = vector.broadcast %2 : i32 to vector<1x512xi32>
    %5 = arith.addi %4, %3 : vector<1x512xi32>
    %c2 = arith.constant 2 : index
    %c0_2 = arith.constant 0 : index
    %6 = vector.load %arg2[%c2, %c0_2] : memref<3x512xf32, #tpu.memory_space<vmem>>, vector<1x512xf32>
    %7 = arith.sitofp %5 : vector<1x512xi32> to vector<1x512xf32>
    %cst = arith.constant 8.000000e+00 : f32
    %8 = vector.broadcast %cst : f32 to vector<1x512xf32>
    %9 = arith.mulf %7, %8 : vector<1x512xf32>
    %10 = arith.addf %9, %6 : vector<1x512xf32>
    %11 = arith.mulf %10, %0 : vector<1x512xf32>
    %cst_3 = arith.constant 5.000000e-01 : f32
    %12 = vector.broadcast %cst_3 : f32 to vector<1x512xf32>
    %13 = arith.cmpf ogt, %1, %12 : vector<1x512xf32>
    %14 = math.cos %11 : vector<1x512xf32>
    %15 = math.sin %11 : vector<1x512xf32>
    %16 = arith.select %13, %14, %15 : vector<1x512xi1>, vector<1x512xf32>
    %c0_4 = arith.constant 0 : index
    %c0_5 = arith.constant 0 : index
    %17 = vector.load %arg1[%c0_4, %c0_5] : memref<1x512xf32, #tpu.memory_space<vmem>>, vector<1x512xf32>
    %18 = arith.addf %17, %16 : vector<1x512xf32>
    %c0_6 = arith.constant 0 : index
    %c0_7 = arith.constant 0 : index
    %19 = vector.load %arg3[%c0_6, %c0_7] : memref<1x512xf32, #tpu.memory_space<vmem>>, vector<1x512xf32>
    tpu.vector_store %arg3[%c0_6, %c0_7], %18 {strides = array<i32>} : memref<1x512xf32, #tpu.memory_space<vmem>>, vector<1x512xf32>,
    return
  }
  func.func @transform_0(%arg0: i32) -> (i32, i32) {
    %c0_i32 = arith.constant 0 : i32
    %c0_i32_0 = arith.constant 0 : i32
    return %arg0, %c0_i32 : i32, i32
  }
  func.func @transform_1(%arg0: i32) -> (i32, i32) {
    %c0_i32 = arith.constant 0 : i32
    %c0_i32_0 = arith.constant 0 : i32
    %c0_i32_1 = arith.constant 0 : i32
    return %c0_i32, %c0_i32_0 : i32, i32
  }
  func.func @transform_2(%arg0: i32) -> (i32, i32) {
    %c0_i32 = arith.constant 0 : i32
    %c0_i32_0 = arith.constant 0 : i32
    return %arg0, %c0_i32 : i32, i32
  }
}

</mosaic_0001>

<llo_original>
// kernel: tpu_custom_call.1
$region0: #{tpu_custom_call.1}
  #allocation0 [shape = 'u32[]', space=smem, size = 0x4, offset = 0x4, fixed_abs, tag = 'smem constant byte address 0x4 - core index']
  #allocation1 [shape = 'u32[144,128]{1,0:T(1,128)}', space=vmem, size = 0x12000, scoped, tag = 'internal scratch']
  %s0 = inlined_call_operand.hbm [shape: f32[1,512], index: 0, kind: input, shape index: {}]
  %s1 = inlined_call_operand.hbm [shape: f32[3,512], index: 1, kind: input, shape index: {}]
  %s2 = inlined_call_operand.hbm [shape: f32[1,512], index: 2, kind: output, shape index: {}]
  %s3 = sld [smem:[#allocation0]]
  $region26: #{tpu_custom_call.1} parent=0
    _
  %s5 = ssub.s32 1, %s3
  %s6 = scalar_select 0, %s5, %s3
  $region1: #{tpu_custom_call.1} parent=0
    #allocation2 [shape = 'u8[2048]{0}', space=vmem, size = 0x800, scoped, tag = 'input window, operand 0, single buffered']
    #allocation3 [shape = 's32[1]{0}', space=sflag, size = 0x4, scoped, tag = 'scoped memory for tpu_custom_call.1']
    #allocation4 [shape = 's32[1]{0}', space=sflag, size = 0x4, scoped, tag = 'scoped memory for tpu_custom_call.1']
    #allocation5 [shape = 'u8[8192]{0}', space=vmem, size = 0x2000, scoped, tag = 'input window, operand 1, single buffered']
    #allocation6 [shape = 's32[1]{0}', space=sflag, size = 0x4, scoped, tag = 'scoped memory for tpu_custom_call.1']
    #allocation7 [shape = 'u8[2048]{0}', space=vmem, size = 0x800, scoped, tag = 'output window, operand 0, single buffered']
    %7 = vsyncpa [#allocation3], 0
    %8 = vsyncpa [#allocation6], 0
    %9 = vsyncpa [#allocation4], 0
    // Predicated region
    $region2: #{tpu_custom_call.1} parent=1 // pred_check
      _
    $region3: #{tpu_custom_call.1} parent=1 // pred_check_branch
      %11 = sbr.rel (0) target = $region5
    $region4: #{tpu_custom_call.1} parent=1 // pred_region
      %s13 = ssub.s32 64, 64
      %14 = vsyncadd [#allocation3], %s13
      %s16 = sshll.u32 [#allocation2], 4
      %s17 = int_to_ptr.vmem [resolvable:$true] %s16
      %19 = dma.hbm_to_vmem [thread:$0]  %s0, 64, %s17, [#allocation3]
    $region5: #{tpu_custom_call.1} parent=1 // pred_fallthru
      _
    // Predicated region
    $region6: #{tpu_custom_call.1} parent=1 // pred_check
      _
    $region7: #{tpu_custom_call.1} parent=1 // pred_check_branch
      %21 = sbr.rel (0) target = $region9
    $region8: #{tpu_custom_call.1} parent=1 // pred_region
      %s23 = ssub.s32 256, 256
      %24 = vsyncadd [#allocation6], %s23
      %s26 = sshll.u32 [#allocation5], 4
      %s27 = int_to_ptr.vmem [resolvable:$true] %s26
      %29 = dma.hbm_to_vmem [thread:$0]  %s1, 256, %s27, [#allocation6]
    $region9: #{tpu_custom_call.1} parent=1 // pred_fallthru
      _
    // Predicated region
    $region10: #{tpu_custom_call.1} parent=1 // pred_check
      _
    $region11: #{tpu_custom_call.1} parent=1 // pred_check_branch
      %31 = sbr.rel (0) target = $region13
    $region12: #{tpu_custom_call.1} parent=1 // pred_region
      %32 = dma.done [#allocation3], 64
    $region13: #{tpu_custom_call.1} parent=1 // pred_fallthru
      _
    // Predicated region
    $region14: #{tpu_custom_call.1} parent=1 // pred_check
      _
    $region15: #{tpu_custom_call.1} parent=1 // pred_check_branch
      %34 = sbr.rel (0) target = $region17
    $region16: #{tpu_custom_call.1} parent=1 // pred_region
      %35 = dma.done [#allocation6], 256
    $region17: #{tpu_custom_call.1} parent=1 // pred_fallthru
      _
    %v36 = vld [vmem:[#allocation5] ss:$4 sm:$0xf]
    %s37 = scalar_lea.vmem [#allocation5], 1
    %v38 = vld [vmem:[%s37] ss:$4 sm:$0xf]
    %v39 = vlaneseq
    %v40 = vshrl.u32 %v39, 7
    %v41 = vstv 0
    %v42 = vadd.s32 %v41, %v40
    %s43 = scalar_lea.vmem [#allocation5], 2
    %v44 = vld [vmem:[%s43] ss:$4 sm:$0xf]
    %v45 = vcvt.s32.f32 %v42
    %v46 = vmul.f32 %v45, 8.0
    %v48 = vlaneseq
    %v49 = vshrl.u32 %v48, 7
    %v50 = vsub.s32 0, %v49
    %v51 = vrot.slane %v44, %v50
    %v52 = vlaneseq
    %v53 = vshrl.u32 %v52, 7
    %v54 = vsub.s32 1, %v53
    %v55 = vrot.slane %v44, %v54
    %v56 = vlaneseq
    %v57 = vshrl.u32 %v56, 7
    %v58 = vsub.s32 2, %v57
    %v59 = vrot.slane %v44, %v58
    %v60 = vlaneseq
    %v61 = vshrl.u32 %v60, 7
    %v62 = vsub.s32 3, %v61
    %v63 = vrot.slane %v44, %v62
    %v68 = vadd.f32 %v46, %v51
    %v69 = vadd.f32 %v46, %v55
    %v70 = vadd.f32 %v46, %v59
    %v71 = vadd.f32 %v46, %v63
    %v73 = vlaneseq
    %v74 = vshrl.u32 %v73, 7
    %v75 = vsub.s32 0, %v74
    %v76 = vrot.slane %v36, %v75
    %v77 = vlaneseq
    %v78 = vshrl.u32 %v77, 7
    %v79 = vsub.s32 1, %v78
    %v80 = vrot.slane %v36, %v79
    %v81 = vlaneseq
    %v82 = vshrl.u32 %v81, 7
    %v83 = vsub.s32 2, %v82
    %v84 = vrot.slane %v36, %v83
    %v85 = vlaneseq
    %v86 = vshrl.u32 %v85, 7
    %v87 = vsub.s32 3, %v86
    %v88 = vrot.slane %v36, %v87
    %v93 = vmul.f32 %v68, %v76
    %v94 = vmul.f32 %v69, %v80
    %v95 = vmul.f32 %v70, %v84
    %v96 = vmul.f32 %v71, %v88
    %vm97 = vcmp.gt.f32.partialorder %v38, 0.5
    %v98 = vand.u32 2147483647, %v93
    %vm99 = vcmp.le.f32.partialorder %v98, 0.7853982
    %vm100 = vcmp.lt.s32.totalorder %v93, 0
    %v101 = vand.u32 %v93, 2139095040
    %v102 = vshrl.u32 %v101, 23
    %v103 = vsub.s32 %v102, 127
    %v104 = vand.u32 2147483647, %v93
    %v105 = vand.u32 %v104, 8388607
    %v106 = vor.u32 %v105, 8388608
    %v107 = vsub.s32 0, %v106
    %v108 = vadd.s32 %v103, 1
    %vm109 = vcmp.gt.s32.totalorder %v108, 0
    %v110 = vsel %vm109, %v108, 0
    %v111 = vshrl.u32 %v110, 5
    %v112 = vand.u32 %v110, 31
    %v113 = vsub.s32 32, %v112
    %v114 = vshrl.u32 683565275, %v113
    %v115 = vshll.u32 683565275, %v112
    %v116 = vshrl.u32 2475754826, %v113
    %v117 = vor.u32 %v115, %v116
    %v118 = vshll.u32 2475754826, %v112
    %v119 = vshrl.u32 2131351028, %v113
    %v120 = vor.u32 %v118, %v119
    %v121 = vshll.u32 2131351028, %v112
    %v122 = vshrl.u32 2102212464, %v113
    %v123 = vor.u32 %v121, %v122
    %v124 = vshll.u32 2102212464, %v112
    %v125 = vshrl.u32 920167782, %v113
    %v126 = vor.u32 %v124, %v125
    %v127 = vshll.u32 920167782, %v112
    %v128 = vshrl.u32 1326507024, %v113
    %v129 = vor.u32 %v127, %v128
    %vm130 = vcmp.lt.s32.totalorder %v111, 1
    %vm131 = vcmp.lt.s32.totalorder %v111, 2
    %vm132 = vcmp.lt.s32.totalorder %v111, 3
    %vm133 = vcmp.lt.s32.totalorder %v111, 4
    %v134 = vsel %vm130, %v114, %v117
    %v135 = vsel %vm133, %v123, 2102212464
    %v136 = vsel %vm132, %v120, %v135
    %v137 = vsel %vm131, %v134, %v136
    %v138 = vsel %vm130, %v117, %v120
    %v139 = vsel %vm133, %v126, 920167782
    %v140 = vsel %vm132, %v123, %v139
    %v141 = vsel %vm131, %v138, %v140
    %v142 = vsel %vm130, %v120, %v123
    %v143 = vsel %vm133, %v129, 1326507024
    %v144 = vsel %vm132, %v126, %v143
    %v145 = vsel %vm131, %v142, %v144
    %v146 = vshll.u32 %v106, 8
    %v147 = vmul.u32.u64.compose %v146, %v145
    %v148 = vextract.low.u32 %v147
    %v149 = vextract.high.u32 %v147
    %v150 = vmul.u32.u64.compose %v146, %v141
    %v151 = vextract.low.u32 %v150
    %v152 = vextract.high.u32 %v150
    %v153 = vmul.u32 %v146, %v137
    %v154 = vadd.s32 %v149, %v151
    %vm155 = vc.u32 %v149, %v151
    %v156 = vadd.s32 %v152, 1
    %v157 = vsel %vm155, %v156, %v152
    %v158 = vadd.s32 %v153, %v157
    %v159 = vadd.s32 %v158, 536870912
    %v160 = vshrl.u32 %v159, 30
    %v161 = vshll.u32 %v160, 30
    %v162 = vsub.s32 %v158, %v161
    %vm163 = vcmp.lt.s32.totalorder %v162, 0
    %v164 = vsub.s32 0, %v162
    %v165 = vsel %vm163, %v164, %v162
    %v166 = vclz %v165
    %v167 = vsub.s32 %v166, 2
    %vm168 = vcmp.gt.s32.totalorder 0, %v167
    %v169 = vsel %vm168, 0, %v167
    %v170 = vsub.s32 32, %v169
    %v171 = vshll.u32 %v162, %v169
    %v172 = vshrl.u32 %v154, %v170
    %v173 = vor.u32 %v171, %v172
    %v174 = vsub.s32 4294967266, %v169
    %v175 = vadd.s32 %v174, 127
    %v176 = vshll.u32 %v175, 23
    %v177 = vor.u32 4788187, %v176
    %v178 = vand.u32 2147483647, %v177
    %v180 = vcvt.s32.f32 %v173
    %v181 = vmul.f32 %v180, %v178
    %v182 = vxor.u32 %v181, 2147483648
    %v183 = vsel %vm100, %v182, %v181
    %v184 = vsub.s32 4, %v160
    %v185 = vsel %vm100, %v184, %v160
    %v186 = vsel %vm99, %v93, %v183
    %v187 = vsel %vm99, 0, %v185
    %v188 = vcosq.f32.pop %v186
    %v189 = vsinq.f32.pop %v186
    %vm190 = vweird.f32 %v93
    %v191 = vand.u32 %v187, 3
    %vm192 = vcmp.lt.s32.totalorder %v191, 2
    %vm193 = vcmp.eq.s32.totalorder %v191, 0
    %v194 = vxor.u32 %v189, 2147483648
    %v195 = vsel %vm193, %v188, %v194
    %vm196 = vcmp.eq.s32.totalorder %v191, 2
    %v197 = vxor.u32 %v188, 2147483648
    %v198 = vsel %vm196, %v197, %v189
    %v199 = vsel %vm192, %v195, %v198
    %v200 = vsel %vm190, nan, %v199
    %v201 = vand.u32 2147483647, %v94
    %vm202 = vcmp.le.f32.partialorder %v201, 0.7853982
    %vm203 = vcmp.lt.s32.totalorder %v94, 0
    %v204 = vand.u32 %v94, 2139095040
    %v205 = vshrl.u32 %v204, 23
    %v206 = vsub.s32 %v205, 127
    %v207 = vand.u32 2147483647, %v94
    %v208 = vand.u32 %v207, 8388607
    %v209 = vor.u32 %v208, 8388608
    %v210 = vsub.s32 0, %v209
    %v211 = vadd.s32 %v206, 1
    %vm212 = vcmp.gt.s32.totalorder %v211, 0
    %v213 = vsel %vm212, %v211, 0
    %v214 = vshrl.u32 %v213, 5
    %v215 = vand.u32 %v213, 31
    %v216 = vsub.s32 32, %v215
    %v217 = vshrl.u32 683565275, %v216
    %v218 = vshll.u32 683565275, %v215
    %v219 = vshrl.u32 2475754826, %v216
    %v220 = vor.u32 %v218, %v219
    %v221 = vshll.u32 2475754826, %v215
    %v222 = vshrl.u32 2131351028, %v216
    %v223 = vor.u32 %v221, %v222
    %v224 = vshll.u32 2131351028, %v215
    %v225 = vshrl.u32 2102212464, %v216
    %v226 = vor.u32 %v224, %v225
    %v227 = vshll.u32 2102212464, %v215
    %v228 = vshrl.u32 920167782, %v216
    %v229 = vor.u32 %v227, %v228
    %v230 = vshll.u32 920167782, %v215
    %v231 = vshrl.u32 1326507024, %v216
    %v232 = vor.u32 %v230, %v231
    %vm233 = vcmp.lt.s32.totalorder %v214, 1
    %vm234 = vcmp.lt.s32.totalorder %v214, 2
    %vm235 = vcmp.lt.s32.totalorder %v214, 3
    %vm236 = vcmp.lt.s32.totalorder %v214, 4
    %v237 = vsel %vm233, %v217, %v220
    %v238 = vsel %vm236, %v226, 2102212464
    %v239 = vsel %vm235, %v223, %v238
    %v240 = vsel %vm234, %v237, %v239
    %v241 = vsel %vm233, %v220, %v223
    %v242 = vsel %vm236, %v229, 920167782
    %v243 = vsel %vm235, %v226, %v242
    %v244 = vsel %vm234, %v241, %v243
    %v245 = vsel %vm233, %v223, %v226
    %v246 = vsel %vm236, %v232, 1326507024
    %v247 = vsel %vm235, %v229, %v246
    %v248 = vsel %vm234, %v245, %v247
    %v249 = vshll.u32 %v209, 8
    %v250 = vmul.u32.u64.compose %v249, %v248
    %v251 = vextract.low.u32 %v250
    %v252 = vextract.high.u32 %v250
    %v253 = vmul.u32.u64.compose %v249, %v244
    %v254 = vextract.low.u32 %v253
    %v255 = vextract.high.u32 %v253
    %v256 = vmul.u32 %v249, %v240
    %v257 = vadd.s32 %v252, %v254
    %vm258 = vc.u32 %v252, %v254
    %v259 = vadd.s32 %v255, 1
    %v260 = vsel %vm258, %v259, %v255
    %v261 = vadd.s32 %v256, %v260
    %v262 = vadd.s32 %v261, 536870912
    %v263 = vshrl.u32 %v262, 30
    %v264 = vshll.u32 %v263, 30
    %v265 = vsub.s32 %v261, %v264
    %vm266 = vcmp.lt.s32.totalorder %v265, 0
    %v267 = vsub.s32 0, %v265
    %v268 = vsel %vm266, %v267, %v265
    %v269 = vclz %v268
    %v270 = vsub.s32 %v269, 2
    %vm271 = vcmp.gt.s32.totalorder 0, %v270
    %v272 = vsel %vm271, 0, %v270
    %v273 = vsub.s32 32, %v272
    %v274 = vshll.u32 %v265, %v272
    %v275 = vshrl.u32 %v257, %v273
    %v276 = vor.u32 %v274, %v275
    %v277 = vsub.s32 4294967266, %v272
    %v278 = vadd.s32 %v277, 127
    %v279 = vshll.u32 %v278, 23
    %v280 = vor.u32 4788187, %v279
    %v281 = vand.u32 2147483647, %v280
    %v283 = vcvt.s32.f32 %v276
    %v284 = vmul.f32 %v283, %v281
    %v285 = vxor.u32 %v284, 2147483648
    %v286 = vsel %vm203, %v285, %v284
    %v287 = vsub.s32 4, %v263
    %v288 = vsel %vm203, %v287, %v263
    %v289 = vsel %vm202, %v94, %v286
    %v290 = vsel %vm202, 0, %v288
    %v291 = vcosq.f32.pop %v289
    %v292 = vsinq.f32.pop %v289
    %vm293 = vweird.f32 %v94
    %v294 = vand.u32 %v290, 3
    %vm295 = vcmp.lt.s32.totalorder %v294, 2
    %vm296 = vcmp.eq.s32.totalorder %v294, 0
    %v297 = vxor.u32 %v292, 2147483648
    %v298 = vsel %vm296, %v291, %v297
    %vm299 = vcmp.eq.s32.totalorder %v294, 2
    %v300 = vxor.u32 %v291, 2147483648
    %v301 = vsel %vm299, %v300, %v292
    %v302 = vsel %vm295, %v298, %v301
    %v303 = vsel %vm293, nan, %v302
    %v304 = vand.u32 2147483647, %v95
    %vm305 = vcmp.le.f32.partialorder %v304, 0.7853982
    %vm306 = vcmp.lt.s32.totalorder %v95, 0
    %v307 = vand.u32 %v95, 2139095040
    %v308 = vshrl.u32 %v307, 23
    %v309 = vsub.s32 %v308, 127
    %v310 = vand.u32 2147483647, %v95
    %v311 = vand.u32 %v310, 8388607
    %v312 = vor.u32 %v311, 8388608
    %v313 = vsub.s32 0, %v312
    %v314 = vadd.s32 %v309, 1
    %vm315 = vcmp.gt.s32.totalorder %v314, 0
    %v316 = vsel %vm315, %v314, 0
    %v317 = vshrl.u32 %v316, 5
    %v318 = vand.u32 %v316, 31
    %v319 = vsub.s32 32, %v318
    %v320 = vshrl.u32 683565275, %v319
    %v321 = vshll.u32 683565275, %v318
    %v322 = vshrl.u32 2475754826, %v319
    %v323 = vor.u32 %v321, %v322
    %v324 = vshll.u32 2475754826, %v318
    %v325 = vshrl.u32 2131351028, %v319
    %v326 = vor.u32 %v324, %v325
    %v327 = vshll.u32 2131351028, %v318
    %v328 = vshrl.u32 2102212464, %v319
    %v329 = vor.u32 %v327, %v328
    %v330 = vshll.u32 2102212464, %v318
    %v331 = vshrl.u32 920167782, %v319
    %v332 = vor.u32 %v330, %v331
    %v333 = vshll.u32 920167782, %v318
    %v334 = vshrl.u32 1326507024, %v319
    %v335 = vor.u32 %v333, %v334
    %vm336 = vcmp.lt.s32.totalorder %v317, 1
    %vm337 = vcmp.lt.s32.totalorder %v317, 2
    %vm338 = vcmp.lt.s32.totalorder %v317, 3
    %vm339 = vcmp.lt.s32.totalorder %v317, 4
    %v340 = vsel %vm336, %v320, %v323
    %v341 = vsel %vm339, %v329, 2102212464
    %v342 = vsel %vm338, %v326, %v341
    %v343 = vsel %vm337, %v340, %v342
    %v344 = vsel %vm336, %v323, %v326
    %v345 = vsel %vm339, %v332, 920167782
    %v346 = vsel %vm338, %v329, %v345
    %v347 = vsel %vm337, %v344, %v346
    %v348 = vsel %vm336, %v326, %v329
    %v349 = vsel %vm339, %v335, 1326507024
    %v350 = vsel %vm338, %v332, %v349
    %v351 = vsel %vm337, %v348, %v350
    %v352 = vshll.u32 %v312, 8
    %v353 = vmul.u32.u64.compose %v352, %v351
    %v354 = vextract.low.u32 %v353
    %v355 = vextract.high.u32 %v353
    %v356 = vmul.u32.u64.compose %v352, %v347
    %v357 = vextract.low.u32 %v356
    %v358 = vextract.high.u32 %v356
    %v359 = vmul.u32 %v352, %v343
    %v360 = vadd.s32 %v355, %v357
    %vm361 = vc.u32 %v355, %v357
    %v362 = vadd.s32 %v358, 1
    %v363 = vsel %vm361, %v362, %v358
    %v364 = vadd.s32 %v359, %v363
    %v365 = vadd.s32 %v364, 536870912
    %v366 = vshrl.u32 %v365, 30
    %v367 = vshll.u32 %v366, 30
    %v368 = vsub.s32 %v364, %v367
    %vm369 = vcmp.lt.s32.totalorder %v368, 0
    %v370 = vsub.s32 0, %v368
    %v371 = vsel %vm369, %v370, %v368
    %v372 = vclz %v371
    %v373 = vsub.s32 %v372, 2
    %vm374 = vcmp.gt.s32.totalorder 0, %v373
    %v375 = vsel %vm374, 0, %v373
    %v376 = vsub.s32 32, %v375
    %v377 = vshll.u32 %v368, %v375
    %v378 = vshrl.u32 %v360, %v376
    %v379 = vor.u32 %v377, %v378
    %v380 = vsub.s32 4294967266, %v375
    %v381 = vadd.s32 %v380, 127
    %v382 = vshll.u32 %v381, 23
    %v383 = vor.u32 4788187, %v382
    %v384 = vand.u32 2147483647, %v383
    %v386 = vcvt.s32.f32 %v379
    %v387 = vmul.f32 %v386, %v384
    %v388 = vxor.u32 %v387, 2147483648
    %v389 = vsel %vm306, %v388, %v387
    %v390 = vsub.s32 4, %v366
    %v391 = vsel %vm306, %v390, %v366
    %v392 = vsel %vm305, %v95, %v389
    %v393 = vsel %vm305, 0, %v391
    %v394 = vcosq.f32.pop %v392
    %v395 = vsinq.f32.pop %v392
    %vm396 = vweird.f32 %v95
    %v397 = vand.u32 %v393, 3
    %vm398 = vcmp.lt.s32.totalorder %v397, 2
    %vm399 = vcmp.eq.s32.totalorder %v397, 0
    %v400 = vxor.u32 %v395, 2147483648
    %v401 = vsel %vm399, %v394, %v400
    %vm402 = vcmp.eq.s32.totalorder %v397, 2
    %v403 = vxor.u32 %v394, 2147483648
    %v404 = vsel %vm402, %v403, %v395
    %v405 = vsel %vm398, %v401, %v404
    %v406 = vsel %vm396, nan, %v405
    %v407 = vand.u32 2147483647, %v96
    %vm408 = vcmp.le.f32.partialorder %v407, 0.7853982
    %vm409 = vcmp.lt.s32.totalorder %v96, 0
    %v410 = vand.u32 %v96, 2139095040
    %v411 = vshrl.u32 %v410, 23
    %v412 = vsub.s32 %v411, 127
    %v413 = vand.u32 2147483647, %v96
    %v414 = vand.u32 %v413, 8388607
    %v415 = vor.u32 %v414, 8388608
    %v416 = vsub.s32 0, %v415
    %v417 = vadd.s32 %v412, 1
    %vm418 = vcmp.gt.s32.totalorder %v417, 0
    %v419 = vsel %vm418, %v417, 0
    %v420 = vshrl.u32 %v419, 5
    %v421 = vand.u32 %v419, 31
    %v422 = vsub.s32 32, %v421
    %v423 = vshrl.u32 683565275, %v422
    %v424 = vshll.u32 683565275, %v421
    %v425 = vshrl.u32 2475754826, %v422
    %v426 = vor.u32 %v424, %v425
    %v427 = vshll.u32 2475754826, %v421
    %v428 = vshrl.u32 2131351028, %v422
    %v429 = vor.u32 %v427, %v428
    %v430 = vshll.u32 2131351028, %v421
    %v431 = vshrl.u32 2102212464, %v422
    %v432 = vor.u32 %v430, %v431
    %v433 = vshll.u32 2102212464, %v421
    %v434 = vshrl.u32 920167782, %v422
    %v435 = vor.u32 %v433, %v434
    %v436 = vshll.u32 920167782, %v421
    %v437 = vshrl.u32 1326507024, %v422
    %v438 = vor.u32 %v436, %v437
    %vm439 = vcmp.lt.s32.totalorder %v420, 1
    %vm440 = vcmp.lt.s32.totalorder %v420, 2
    %vm441 = vcmp.lt.s32.totalorder %v420, 3
    %vm442 = vcmp.lt.s32.totalorder %v420, 4
    %v443 = vsel %vm439, %v423, %v426
    %v444 = vsel %vm442, %v432, 2102212464
    %v445 = vsel %vm441, %v429, %v444
    %v446 = vsel %vm440, %v443, %v445
    %v447 = vsel %vm439, %v426, %v429
    %v448 = vsel %vm442, %v435, 920167782
    %v449 = vsel %vm441, %v432, %v448
    %v450 = vsel %vm440, %v447, %v449
    %v451 = vsel %vm439, %v429, %v432
    %v452 = vsel %vm442, %v438, 1326507024
    %v453 = vsel %vm441, %v435, %v452
    %v454 = vsel %vm440, %v451, %v453
    %v455 = vshll.u32 %v415, 8
    %v456 = vmul.u32.u64.compose %v455, %v454
    %v457 = vextract.low.u32 %v456
    %v458 = vextract.high.u32 %v456
    %v459 = vmul.u32.u64.compose %v455, %v450
    %v460 = vextract.low.u32 %v459
    %v461 = vextract.high.u32 %v459
    %v462 = vmul.u32 %v455, %v446
    %v463 = vadd.s32 %v458, %v460
    %vm464 = vc.u32 %v458, %v460
    %v465 = vadd.s32 %v461, 1
    %v466 = vsel %vm464, %v465, %v461
    %v467 = vadd.s32 %v462, %v466
    %v468 = vadd.s32 %v467, 536870912
    %v469 = vshrl.u32 %v468, 30
    %v470 = vshll.u32 %v469, 30
    %v471 = vsub.s32 %v467, %v470
    %vm472 = vcmp.lt.s32.totalorder %v471, 0
    %v473 = vsub.s32 0, %v471
    %v474 = vsel %vm472, %v473, %v471
    %v475 = vclz %v474
    %v476 = vsub.s32 %v475, 2
    %vm477 = vcmp.gt.s32.totalorder 0, %v476
    %v478 = vsel %vm477, 0, %v476
    %v479 = vsub.s32 32, %v478
    %v480 = vshll.u32 %v471, %v478
    %v481 = vshrl.u32 %v463, %v479
    %v482 = vor.u32 %v480, %v481
    %v483 = vsub.s32 4294967266, %v478
    %v484 = vadd.s32 %v483, 127
    %v485 = vshll.u32 %v484, 23
    %v486 = vor.u32 4788187, %v485
    %v487 = vand.u32 2147483647, %v486
    %v489 = vcvt.s32.f32 %v482
    %v490 = vmul.f32 %v489, %v487
    %v491 = vxor.u32 %v490, 2147483648
    %v492 = vsel %vm409, %v491, %v490
    %v493 = vsub.s32 4, %v469
    %v494 = vsel %vm409, %v493, %v469
    %v495 = vsel %vm408, %v96, %v492
    %v496 = vsel %vm408, 0, %v494
    %v497 = vcosq.f32.pop %v495
    %v498 = vsinq.f32.pop %v495
    %vm499 = vweird.f32 %v96
    %v500 = vand.u32 %v496, 3
    %vm501 = vcmp.lt.s32.totalorder %v500, 2
    %vm502 = vcmp.eq.s32.totalorder %v500, 0
    %v503 = vxor.u32 %v498, 2147483648
    %v504 = vsel %vm502, %v497, %v503
    %vm505 = vcmp.eq.s32.totalorder %v500, 2
    %v506 = vxor.u32 %v497, 2147483648
    %v507 = vsel %vm505, %v506, %v498
    %v508 = vsel %vm501, %v504, %v507
    %v509 = vsel %vm499, nan, %v508
    %v510 = vand.u32 2147483647, %v93
    %vm511 = vcmp.le.f32.partialorder %v510, 0.7853982
    %vm512 = vcmp.lt.s32.totalorder %v93, 0
    %v513 = vand.u32 %v93, 2139095040
    %v514 = vshrl.u32 %v513, 23
    %v515 = vsub.s32 %v514, 127
    %v516 = vand.u32 2147483647, %v93
    %v517 = vand.u32 %v516, 8388607
    %v518 = vor.u32 %v517, 8388608
    %v519 = vsub.s32 0, %v518
    %v520 = vadd.s32 %v515, 1
    %vm521 = vcmp.gt.s32.totalorder %v520, 0
    %v522 = vsel %vm521, %v520, 0
    %v523 = vshrl.u32 %v522, 5
    %v524 = vand.u32 %v522, 31
    %v525 = vsub.s32 32, %v524
    %v526 = vshrl.u32 683565275, %v525
    %v527 = vshll.u32 683565275, %v524
    %v528 = vshrl.u32 2475754826, %v525
    %v529 = vor.u32 %v527, %v528
    %v530 = vshll.u32 2475754826, %v524
    %v531 = vshrl.u32 2131351028, %v525
    %v532 = vor.u32 %v530, %v531
    %v533 = vshll.u32 2131351028, %v524
    %v534 = vshrl.u32 2102212464, %v525
    %v535 = vor.u32 %v533, %v534
    %v536 = vshll.u32 2102212464, %v524
    %v537 = vshrl.u32 920167782, %v525
    %v538 = vor.u32 %v536, %v537
    %v539 = vshll.u32 920167782, %v524
    %v540 = vshrl.u32 1326507024, %v525
    %v541 = vor.u32 %v539, %v540
    %vm542 = vcmp.lt.s32.totalorder %v523, 1
    %vm543 = vcmp.lt.s32.totalorder %v523, 2
    %vm544 = vcmp.lt.s32.totalorder %v523, 3
    %vm545 = vcmp.lt.s32.totalorder %v523, 4
    %v546 = vsel %vm542, %v526, %v529
    %v547 = vsel %vm545, %v535, 2102212464
    %v548 = vsel %vm544, %v532, %v547
    %v549 = vsel %vm543, %v546, %v548
    %v550 = vsel %vm542, %v529, %v532
    %v551 = vsel %vm545, %v538, 920167782
    %v552 = vsel %vm544, %v535, %v551
    %v553 = vsel %vm543, %v550, %v552
    %v554 = vsel %vm542, %v532, %v535
    %v555 = vsel %vm545, %v541, 1326507024
    %v556 = vsel %vm544, %v538, %v555
    %v557 = vsel %vm543, %v554, %v556
    %v558 = vshll.u32 %v518, 8
    %v559 = vmul.u32.u64.compose %v558, %v557
    %v560 = vextract.low.u32 %v559
    %v561 = vextract.high.u32 %v559
    %v562 = vmul.u32.u64.compose %v558, %v553
    %v563 = vextract.low.u32 %v562
    %v564 = vextract.high.u32 %v562
    %v565 = vmul.u32 %v558, %v549
    %v566 = vadd.s32 %v561, %v563
    %vm567 = vc.u32 %v561, %v563
    %v568 = vadd.s32 %v564, 1
    %v569 = vsel %vm567, %v568, %v564
    %v570 = vadd.s32 %v565, %v569
    %v571 = vadd.s32 %v570, 536870912
    %v572 = vshrl.u32 %v571, 30
    %v573 = vshll.u32 %v572, 30
    %v574 = vsub.s32 %v570, %v573
    %vm575 = vcmp.lt.s32.totalorder %v574, 0
    %v576 = vsub.s32 0, %v574
    %v577 = vsel %vm575, %v576, %v574
    %v578 = vclz %v577
    %v579 = vsub.s32 %v578, 2
    %vm580 = vcmp.gt.s32.totalorder 0, %v579
    %v581 = vsel %vm580, 0, %v579
    %v582 = vsub.s32 32, %v581
    %v583 = vshll.u32 %v574, %v581
    %v584 = vshrl.u32 %v566, %v582
    %v585 = vor.u32 %v583, %v584
    %v586 = vsub.s32 4294967266, %v581
    %v587 = vadd.s32 %v586, 127
    %v588 = vshll.u32 %v587, 23
    %v589 = vor.u32 4788187, %v588
    %v590 = vand.u32 2147483647, %v589
    %v592 = vcvt.s32.f32 %v585
    %v593 = vmul.f32 %v592, %v590
    %v594 = vxor.u32 %v593, 2147483648
    %v595 = vsel %vm512, %v594, %v593
    %v596 = vsub.s32 4, %v572
    %v597 = vsel %vm512, %v596, %v572
    %v598 = vsel %vm511, %v93, %v595
    %v599 = vsel %vm511, 0, %v597
    %v600 = vcosq.f32.pop %v598
    %v601 = vsinq.f32.pop %v598
    %vm602 = vweird.f32 %v93
    %v603 = vadd.s32 %v599, 3
    %v604 = vand.u32 %v603, 3
    %vm605 = vcmp.lt.s32.totalorder %v604, 2
    %vm606 = vcmp.eq.s32.totalorder %v604, 0
    %v607 = vxor.u32 %v601, 2147483648
    %v608 = vsel %vm606, %v600, %v607
    %vm609 = vcmp.eq.s32.totalorder %v604, 2
    %v610 = vxor.u32 %v600, 2147483648
    %v611 = vsel %vm609, %v610, %v601
    %v612 = vsel %vm605, %v608, %v611
    %v613 = vsel %vm602, nan, %v612
    %v614 = vand.u32 2147483647, %v94
    %vm615 = vcmp.le.f32.partialorder %v614, 0.7853982
    %vm616 = vcmp.lt.s32.totalorder %v94, 0
    %v617 = vand.u32 %v94, 2139095040
    %v618 = vshrl.u32 %v617, 23
    %v619 = vsub.s32 %v618, 127
    %v620 = vand.u32 2147483647, %v94
    %v621 = vand.u32 %v620, 8388607
    %v622 = vor.u32 %v621, 8388608
    %v623 = vsub.s32 0, %v622
    %v624 = vadd.s32 %v619, 1
    %vm625 = vcmp.gt.s32.totalorder %v624, 0
    %v626 = vsel %vm625, %v624, 0
    %v627 = vshrl.u32 %v626, 5
    %v628 = vand.u32 %v626, 31
    %v629 = vsub.s32 32, %v628
    %v630 = vshrl.u32 683565275, %v629
    %v631 = vshll.u32 683565275, %v628
    %v632 = vshrl.u32 2475754826, %v629
    %v633 = vor.u32 %v631, %v632
    %v634 = vshll.u32 2475754826, %v628
    %v635 = vshrl.u32 2131351028, %v629
    %v636 = vor.u32 %v634, %v635
    %v637 = vshll.u32 2131351028, %v628
    %v638 = vshrl.u32 2102212464, %v629
    %v639 = vor.u32 %v637, %v638
    %v640 = vshll.u32 2102212464, %v628
    %v641 = vshrl.u32 920167782, %v629
    %v642 = vor.u32 %v640, %v641
    %v643 = vshll.u32 920167782, %v628
    %v644 = vshrl.u32 1326507024, %v629
    %v645 = vor.u32 %v643, %v644
    %vm646 = vcmp.lt.s32.totalorder %v627, 1
    %vm647 = vcmp.lt.s32.totalorder %v627, 2
    %vm648 = vcmp.lt.s32.totalorder %v627, 3
    %vm649 = vcmp.lt.s32.totalorder %v627, 4
    %v650 = vsel %vm646, %v630, %v633
    %v651 = vsel %vm649, %v639, 2102212464
    %v652 = vsel %vm648, %v636, %v651
    %v653 = vsel %vm647, %v650, %v652
    %v654 = vsel %vm646, %v633, %v636
    %v655 = vsel %vm649, %v642, 920167782
    %v656 = vsel %vm648, %v639, %v655
    %v657 = vsel %vm647, %v654, %v656
    %v658 = vsel %vm646, %v636, %v639
    %v659 = vsel %vm649, %v645, 1326507024
    %v660 = vsel %vm648, %v642, %v659
    %v661 = vsel %vm647, %v658, %v660
    %v662 = vshll.u32 %v622, 8
    %v663 = vmul.u32.u64.compose %v662, %v661
    %v664 = vextract.low.u32 %v663
    %v665 = vextract.high.u32 %v663
    %v666 = vmul.u32.u64.compose %v662, %v657
    %v667 = vextract.low.u32 %v666
    %v668 = vextract.high.u32 %v666
    %v669 = vmul.u32 %v662, %v653
    %v670 = vadd.s32 %v665, %v667
    %vm671 = vc.u32 %v665, %v667
    %v672 = vadd.s32 %v668, 1
    %v673 = vsel %vm671, %v672, %v668
    %v674 = vadd.s32 %v669, %v673
    %v675 = vadd.s32 %v674, 536870912
    %v676 = vshrl.u32 %v675, 30
    %v677 = vshll.u32 %v676, 30
    %v678 = vsub.s32 %v674, %v677
    %vm679 = vcmp.lt.s32.totalorder %v678, 0
    %v680 = vsub.s32 0, %v678
    %v681 = vsel %vm679, %v680, %v678
    %v682 = vclz %v681
    %v683 = vsub.s32 %v682, 2
    %vm684 = vcmp.gt.s32.totalorder 0, %v683
    %v685 = vsel %vm684, 0, %v683
    %v686 = vsub.s32 32, %v685
    %v687 = vshll.u32 %v678, %v685
    %v688 = vshrl.u32 %v670, %v686
    %v689 = vor.u32 %v687, %v688
    %v690 = vsub.s32 4294967266, %v685
    %v691 = vadd.s32 %v690, 127
    %v692 = vshll.u32 %v691, 23
    %v693 = vor.u32 4788187, %v692
    %v694 = vand.u32 2147483647, %v693
    %v696 = vcvt.s32.f32 %v689
    %v697 = vmul.f32 %v696, %v694
    %v698 = vxor.u32 %v697, 2147483648
    %v699 = vsel %vm616, %v698, %v697
    %v700 = vsub.s32 4, %v676
    %v701 = vsel %vm616, %v700, %v676
    %v702 = vsel %vm615, %v94, %v699
    %v703 = vsel %vm615, 0, %v701
    %v704 = vcosq.f32.pop %v702
    %v705 = vsinq.f32.pop %v702
    %vm706 = vweird.f32 %v94
    %v707 = vadd.s32 %v703, 3
    %v708 = vand.u32 %v707, 3
    %vm709 = vcmp.lt.s32.totalorder %v708, 2
    %vm710 = vcmp.eq.s32.totalorder %v708, 0
    %v711 = vxor.u32 %v705, 2147483648
    %v712 = vsel %vm710, %v704, %v711
    %vm713 = vcmp.eq.s32.totalorder %v708, 2
    %v714 = vxor.u32 %v704, 2147483648
    %v715 = vsel %vm713, %v714, %v705
    %v716 = vsel %vm709, %v712, %v715
    %v717 = vsel %vm706, nan, %v716
    %v718 = vand.u32 2147483647, %v95
    %vm719 = vcmp.le.f32.partialorder %v718, 0.7853982
    %vm720 = vcmp.lt.s32.totalorder %v95, 0
    %v721 = vand.u32 %v95, 2139095040
    %v722 = vshrl.u32 %v721, 23
    %v723 = vsub.s32 %v722, 127
    %v724 = vand.u32 2147483647, %v95
    %v725 = vand.u32 %v724, 8388607
    %v726 = vor.u32 %v725, 8388608
    %v727 = vsub.s32 0, %v726
    %v728 = vadd.s32 %v723, 1
    %vm729 = vcmp.gt.s32.totalorder %v728, 0
    %v730 = vsel %vm729, %v728, 0
    %v731 = vshrl.u32 %v730, 5
    %v732 = vand.u32 %v730, 31
    %v733 = vsub.s32 32, %v732
    %v734 = vshrl.u32 683565275, %v733
    %v735 = vshll.u32 683565275, %v732
    %v736 = vshrl.u32 2475754826, %v733
    %v737 = vor.u32 %v735, %v736
    %v738 = vshll.u32 2475754826, %v732
    %v739 = vshrl.u32 2131351028, %v733
    %v740 = vor.u32 %v738, %v739
    %v741 = vshll.u32 2131351028, %v732
    %v742 = vshrl.u32 2102212464, %v733
    %v743 = vor.u32 %v741, %v742
    %v744 = vshll.u32 2102212464, %v732
    %v745 = vshrl.u32 920167782, %v733
    %v746 = vor.u32 %v744, %v745
    %v747 = vshll.u32 920167782, %v732
    %v748 = vshrl.u32 1326507024, %v733
    %v749 = vor.u32 %v747, %v748
    %vm750 = vcmp.lt.s32.totalorder %v731, 1
    %vm751 = vcmp.lt.s32.totalorder %v731, 2
    %vm752 = vcmp.lt.s32.totalorder %v731, 3
    %vm753 = vcmp.lt.s32.totalorder %v731, 4
    %v754 = vsel %vm750, %v734, %v737
    %v755 = vsel %vm753, %v743, 2102212464
    %v756 = vsel %vm752, %v740, %v755
    %v757 = vsel %vm751, %v754, %v756
    %v758 = vsel %vm750, %v737, %v740
    %v759 = vsel %vm753, %v746, 920167782
    %v760 = vsel %vm752, %v743, %v759
    %v761 = vsel %vm751, %v758, %v760
    %v762 = vsel %vm750, %v740, %v743
    %v763 = vsel %vm753, %v749, 1326507024
    %v764 = vsel %vm752, %v746, %v763
    %v765 = vsel %vm751, %v762, %v764
    %v766 = vshll.u32 %v726, 8
    %v767 = vmul.u32.u64.compose %v766, %v765
    %v768 = vextract.low.u32 %v767
    %v769 = vextract.high.u32 %v767
    %v770 = vmul.u32.u64.compose %v766, %v761
    %v771 = vextract.low.u32 %v770
    %v772 = vextract.high.u32 %v770
    %v773 = vmul.u32 %v766, %v757
    %v774 = vadd.s32 %v769, %v771
    %vm775 = vc.u32 %v769, %v771
    %v776 = vadd.s32 %v772, 1
    %v777 = vsel %vm775, %v776, %v772
    %v778 = vadd.s32 %v773, %v777
    %v779 = vadd.s32 %v778, 536870912
    %v780 = vshrl.u32 %v779, 30
    %v781 = vshll.u32 %v780, 30
    %v782 = vsub.s32 %v778, %v781
    %vm783 = vcmp.lt.s32.totalorder %v782, 0
    %v784 = vsub.s32 0, %v782
    %v785 = vsel %vm783, %v784, %v782
    %v786 = vclz %v785
    %v787 = vsub.s32 %v786, 2
    %vm788 = vcmp.gt.s32.totalorder 0, %v787
    %v789 = vsel %vm788, 0, %v787
    %v790 = vsub.s32 32, %v789
    %v791 = vshll.u32 %v782, %v789
    %v792 = vshrl.u32 %v774, %v790
    %v793 = vor.u32 %v791, %v792
    %v794 = vsub.s32 4294967266, %v789
    %v795 = vadd.s32 %v794, 127
    %v796 = vshll.u32 %v795, 23
    %v797 = vor.u32 4788187, %v796
    %v798 = vand.u32 2147483647, %v797
    %v800 = vcvt.s32.f32 %v793
    %v801 = vmul.f32 %v800, %v798
    %v802 = vxor.u32 %v801, 2147483648
    %v803 = vsel %vm720, %v802, %v801
    %v804 = vsub.s32 4, %v780
    %v805 = vsel %vm720, %v804, %v780
    %v806 = vsel %vm719, %v95, %v803
    %v807 = vsel %vm719, 0, %v805
    %v808 = vcosq.f32.pop %v806
    %v809 = vsinq.f32.pop %v806
    %vm810 = vweird.f32 %v95
    %v811 = vadd.s32 %v807, 3
    %v812 = vand.u32 %v811, 3
    %vm813 = vcmp.lt.s32.totalorder %v812, 2
    %vm814 = vcmp.eq.s32.totalorder %v812, 0
    %v815 = vxor.u32 %v809, 2147483648
    %v816 = vsel %vm814, %v808, %v815
    %vm817 = vcmp.eq.s32.totalorder %v812, 2
    %v818 = vxor.u32 %v808, 2147483648
    %v819 = vsel %vm817, %v818, %v809
    %v820 = vsel %vm813, %v816, %v819
    %v821 = vsel %vm810, nan, %v820
    %v822 = vand.u32 2147483647, %v96
    %vm823 = vcmp.le.f32.partialorder %v822, 0.7853982
    %vm824 = vcmp.lt.s32.totalorder %v96, 0
    %v825 = vand.u32 %v96, 2139095040
    %v826 = vshrl.u32 %v825, 23
    %v827 = vsub.s32 %v826, 127
    %v828 = vand.u32 2147483647, %v96
    %v829 = vand.u32 %v828, 8388607
    %v830 = vor.u32 %v829, 8388608
    %v831 = vsub.s32 0, %v830
    %v832 = vadd.s32 %v827, 1
    %vm833 = vcmp.gt.s32.totalorder %v832, 0
    %v834 = vsel %vm833, %v832, 0
    %v835 = vshrl.u32 %v834, 5
    %v836 = vand.u32 %v834, 31
    %v837 = vsub.s32 32, %v836
    %v838 = vshrl.u32 683565275, %v837
    %v839 = vshll.u32 683565275, %v836
    %v840 = vshrl.u32 2475754826, %v837
    %v841 = vor.u32 %v839, %v840
    %v842 = vshll.u32 2475754826, %v836
    %v843 = vshrl.u32 2131351028, %v837
    %v844 = vor.u32 %v842, %v843
    %v845 = vshll.u32 2131351028, %v836
    %v846 = vshrl.u32 2102212464, %v837
    %v847 = vor.u32 %v845, %v846
    %v848 = vshll.u32 2102212464, %v836
    %v849 = vshrl.u32 920167782, %v837
    %v850 = vor.u32 %v848, %v849
    %v851 = vshll.u32 920167782, %v836
    %v852 = vshrl.u32 1326507024, %v837
    %v853 = vor.u32 %v851, %v852
    %vm854 = vcmp.lt.s32.totalorder %v835, 1
    %vm855 = vcmp.lt.s32.totalorder %v835, 2
    %vm856 = vcmp.lt.s32.totalorder %v835, 3
    %vm857 = vcmp.lt.s32.totalorder %v835, 4
    %v858 = vsel %vm854, %v838, %v841
    %v859 = vsel %vm857, %v847, 2102212464
    %v860 = vsel %vm856, %v844, %v859
    %v861 = vsel %vm855, %v858, %v860
    %v862 = vsel %vm854, %v841, %v844
    %v863 = vsel %vm857, %v850, 920167782
    %v864 = vsel %vm856, %v847, %v863
    %v865 = vsel %vm855, %v862, %v864
    %v866 = vsel %vm854, %v844, %v847
    %v867 = vsel %vm857, %v853, 1326507024
    %v868 = vsel %vm856, %v850, %v867
    %v869 = vsel %vm855, %v866, %v868
    %v870 = vshll.u32 %v830, 8
    %v871 = vmul.u32.u64.compose %v870, %v869
    %v872 = vextract.low.u32 %v871
    %v873 = vextract.high.u32 %v871
    %v874 = vmul.u32.u64.compose %v870, %v865
    %v875 = vextract.low.u32 %v874
    %v876 = vextract.high.u32 %v874
    %v877 = vmul.u32 %v870, %v861
    %v878 = vadd.s32 %v873, %v875
    %vm879 = vc.u32 %v873, %v875
    %v880 = vadd.s32 %v876, 1
    %v881 = vsel %vm879, %v880, %v876
    %v882 = vadd.s32 %v877, %v881
    %v883 = vadd.s32 %v882, 536870912
    %v884 = vshrl.u32 %v883, 30
    %v885 = vshll.u32 %v884, 30
    %v886 = vsub.s32 %v882, %v885
    %vm887 = vcmp.lt.s32.totalorder %v886, 0
    %v888 = vsub.s32 0, %v886
    %v889 = vsel %vm887, %v888, %v886
    %v890 = vclz %v889
    %v891 = vsub.s32 %v890, 2
    %vm892 = vcmp.gt.s32.totalorder 0, %v891
    %v893 = vsel %vm892, 0, %v891
    %v894 = vsub.s32 32, %v893
    %v895 = vshll.u32 %v886, %v893
    %v896 = vshrl.u32 %v878, %v894
    %v897 = vor.u32 %v895, %v896
    %v898 = vsub.s32 4294967266, %v893
    %v899 = vadd.s32 %v898, 127
    %v900 = vshll.u32 %v899, 23
    %v901 = vor.u32 4788187, %v900
    %v902 = vand.u32 2147483647, %v901
    %v904 = vcvt.s32.f32 %v897
    %v905 = vmul.f32 %v904, %v902
    %v906 = vxor.u32 %v905, 2147483648
    %v907 = vsel %vm824, %v906, %v905
    %v908 = vsub.s32 4, %v884
    %v909 = vsel %vm824, %v908, %v884
    %v910 = vsel %vm823, %v96, %v907
    %v911 = vsel %vm823, 0, %v909
    %v912 = vcosq.f32.pop %v910
    %v913 = vsinq.f32.pop %v910
    %vm914 = vweird.f32 %v96
    %v915 = vadd.s32 %v911, 3
    %v916 = vand.u32 %v915, 3
    %vm917 = vcmp.lt.s32.totalorder %v916, 2
    %vm918 = vcmp.eq.s32.totalorder %v916, 0
    %v919 = vxor.u32 %v913, 2147483648
    %v920 = vsel %vm918, %v912, %v919
    %vm921 = vcmp.eq.s32.totalorder %v916, 2
    %v922 = vxor.u32 %v912, 2147483648
    %v923 = vsel %vm921, %v922, %v913
    %v924 = vsel %vm917, %v920, %v923
    %v925 = vsel %vm914, nan, %v924
    %v930 = vcombine.low %v200, %v303
    %v931 = vcombine.low %v406, %v509
    %v933 = vunpack.c.l.s4 1966171168
    %v934 = vunpack.c.0.s8 %v933
    %v935 = vlaneseq
    %v936 = vshrl.u32 %v935, 7
    %v937 = vsub.s32 %v934, %v936
    %v938 = vrot.slane %v930, %v937
    %v940 = vunpack.c.l.s4 1966171168
    %v941 = vunpack.c.0.s8 %v940
    %v942 = vlaneseq
    %v943 = vshrl.u32 %v942, 7
    %v944 = vsub.s32 %v941, %v943
    %v945 = vrot.slane %v931, %v944
    %v946 = vcombine.low %v938, %v945
    %v948 = vunpack.c.l.s4 1966171168
    %v949 = vunpack.c.0.s8 %v948
    %v950 = vlaneseq
    %v951 = vshrl.u32 %v950, 7
    %v952 = vsub.s32 %v949, %v951
    %v953 = vrot.slane %v946, %v952
    %v959 = vcombine.low %v613, %v717
    %v960 = vcombine.low %v821, %v925
    %v962 = vunpack.c.l.s4 1966171168
    %v963 = vunpack.c.0.s8 %v962
    %v964 = vlaneseq
    %v965 = vshrl.u32 %v964, 7
    %v966 = vsub.s32 %v963, %v965
    %v967 = vrot.slane %v959, %v966
    %v969 = vunpack.c.l.s4 1966171168
    %v970 = vunpack.c.0.s8 %v969
    %v971 = vlaneseq
    %v972 = vshrl.u32 %v971, 7
    %v973 = vsub.s32 %v970, %v972
    %v974 = vrot.slane %v960, %v973
    %v975 = vcombine.low %v967, %v974
    %v977 = vunpack.c.l.s4 1966171168
    %v978 = vunpack.c.0.s8 %v977
    %v979 = vlaneseq
    %v980 = vshrl.u32 %v979, 7
    %v981 = vsub.s32 %v978, %v980
    %v982 = vrot.slane %v975, %v981
    %v984 = vsel %vm97, %v953, %v982
    %v985 = vld [vmem:[#allocation2] sm:$0xf]
    %v986 = vadd.f32 %v985, %v984
    %v987 = vlaneseq
    %vm988 = vcmp.ge.s32.totalorder %v987, 0
    %vm989 = vcmp.lt.s32.totalorder %v987, 512
    %vm990 = vmand %vm988, %vm989
    %991 = vst.msk [vmem:[#allocation7] sm:$0xf] %vm990, %v986
    // Predicated region
    $region18: #{tpu_custom_call.1} parent=1 // pred_check
      _
    $region19: #{tpu_custom_call.1} parent=1 // pred_check_branch
      %993 = sbr.rel (0) target = $region21
    $region20: #{tpu_custom_call.1} parent=1 // pred_region
      %s995 = ssub.s32 64, 64
      %996 = vsyncadd [#allocation4], %s995
      %s998 = sshll.u32 [#allocation7], 4
      %s999 = int_to_ptr.vmem [resolvable:$true] %s998
      %1001 = dma.vmem_to_hbm [thread:$0]  %s999, 64, %s2, [#allocation4]
    $region21: #{tpu_custom_call.1} parent=1 // pred_fallthru
      _
    // Predicated region
    $region22: #{tpu_custom_call.1} parent=1 // pred_check
      _
    $region23: #{tpu_custom_call.1} parent=1 // pred_check_branch
      %1003 = sbr.rel (0) target = $region25
    $region24: #{tpu_custom_call.1} parent=1 // pred_region
      %1004 = dma.done [#allocation4], 64
    $region25: #{tpu_custom_call.1} parent=1 // pred_fallthru
      _
    %1005 = vsyncpa [#allocation3], 1
    %1006 = vsyncpa [#allocation6], 1
    %1007 = vsyncpa [#allocation4], 1

</llo_original>
